<compile_context>
chip_gen: v7x
topology: tpu7x:2x2x1
jax: 0.10.0
libtpu: 0.0.40
codegen_flags: <defaults>
</compile_context>

<pallas_src>
import functools

import jax
import jax.numpy as jnp
from jax.experimental import pallas as pl
from jax.experimental.pallas import tpu as pltpu


def _mlp_kernel(x_ref, w1_ref, b1_ref, w2_ref, b2_ref, o_ref, *, compute_dtype):
    # x_ref/o_ref: (block_rows, lanes) f32 VMEM tiles, batch elements on lanes.
    # w1/b1/w2: (10,) f32 in SMEM; b2: (1,) f32 in SMEM.
    xc = x_ref[...].astype(compute_dtype)
    hidden = w1_ref.shape[0]                      # 10 -> static full unroll
    # Two f32 accumulators (even/odd j) halve the serial add dependency chain;
    # acc0 is seeded with b2 so no trailing full-vreg add is needed.
    acc0 = jnp.full(xc.shape, b2_ref[0], dtype=jnp.float32)
    acc1 = jnp.zeros(xc.shape, dtype=jnp.float32)
    for j in range(hidden):
        # layer1 (1->10): scalar FMA (VPU); tanh on the EUP; layer2 (10->1):
        # scalar-weighted f32 accumulation.  No MXU anywhere.
        pre = w1_ref[j].astype(compute_dtype) * xc + b1_ref[j].astype(compute_dtype)
        t = jnp.tanh(pre)
        term = w2_ref[j] * t.astype(jnp.float32)
        if j % 2 == 0:
            acc0 = acc0 + term
        else:
            acc1 = acc1 + term
    o_ref[...] = (acc0 + acc1).astype(o_ref.dtype)


def _round_up(a, b):
    return ((a + b - 1) // b) * b


def _pallas_forward(x, w1, b1, w2, b2, *, lanes=512, max_block_rows=1024,
                    target_grid_steps=8, compute_dtype=jnp.float32):
    B = x.shape[0]
    xf = x.reshape(-1).astype(jnp.float32)

    # Lane-dense (rows, lanes) layout; rows multiple of 8 (sublane tiling).
    rows_needed = _round_up(max(pl.cdiv(B, lanes), 8), 8)

    # Block sizing:
    #  - enough blocks that each block is <= max_block_rows (~2 MiB at 1024x512)
    #  - at least min(target_grid_steps, rows_needed//8) blocks so the grid has
    #    multiple steps and both v7x TensorCores get work
    #  - block_rows rounded up to 8 -> zero-padding bounded to <8 rows/block
    nblocks = max(pl.cdiv(rows_needed, max_block_rows),
                  min(target_grid_steps, rows_needed // 8), 1)
    block_rows = _round_up(pl.cdiv(rows_needed, nblocks), 8)
    nblocks = pl.cdiv(rows_needed, block_rows)
    rows = nblocks * block_rows

    padded = rows * lanes
    if padded != B:
        # TODO(synk): the pad + matching output slice are extra HBM passes; they
        # disappear when B is already block-aligned, and the small-batch jnp
        # fallback covers the regime where they would dominate.
        xf = jnp.pad(xf, (0, padded - B))
    x2d = xf.reshape(rows, lanes)

    kernel = functools.partial(_mlp_kernel, compute_dtype=compute_dtype)
    out2d = pl.pallas_call(
        kernel,
        out_shape=jax.ShapeDtypeStruct((rows, lanes), jnp.float32),
        grid=(nblocks,),
        in_specs=[
            pl.BlockSpec((block_rows, lanes), lambda i: (i, 0)),   # x tiles (VMEM)
            pl.BlockSpec(memory_space=pltpu.SMEM),                 # w1 (10,)
            pl.BlockSpec(memory_space=pltpu.SMEM),                 # b1 (10,)
            pl.BlockSpec(memory_space=pltpu.SMEM),                 # w2 (10,)
            pl.BlockSpec(memory_space=pltpu.SMEM),                 # b2 (1,)
        ],
        out_specs=pl.BlockSpec((block_rows, lanes), lambda i: (i, 0)),
        compiler_params=pltpu.CompilerParams(
            dimension_semantics=("parallel",),     # batch axis -> megacore / 2 TCs
            vmem_limit_bytes=32 * 1024 * 1024,     # <=8 MiB live; safe on v7x 64 MiB
        ),
    )(x2d, w1, b1, w2, b2)

    out_flat = out2d.reshape(-1)
    if padded != B:
        out_flat = out_flat[:B]
    return out_flat.reshape(B, 1)


def nonlinear_regression_forward(x, w1, b1, w2, b2, *, small_batch_threshold=4096,
                                 compute_dtype=jnp.float32, **pallas_kwargs):
    """x: (B, 1) f32; w1, b1, w2: (10,) f32; b2: (1,) f32.  Returns (B, 1) f32."""
    B = x.shape[0]
    if B < small_batch_threshold:
        # Kernel launch + pipeline prologue dominates for tiny B; a fused XLA
        # elementwise expression is faster (and avoids the pad/slice passes).
        h = jnp.tanh(x.astype(jnp.float32) * w1.reshape(1, -1) + b1.reshape(1, -1))
        return h @ w2.reshape(-1, 1) + b2.reshape(1, 1)
    return _pallas_forward(x, w1, b1, w2, b2, compute_dtype=compute_dtype,
                           **pallas_kwargs)


def init_params(key):
    # Mimics nn.Linear default init (uniform +/- 1/sqrt(fan_in)).
    k1, k2, k3, k4 = jax.random.split(key, 4)
    bound1 = 1.0                     # layer1 fan_in = 1
    bound2 = 1.0 / jnp.sqrt(10.0)    # layer2 fan_in = 10
    w1 = jax.random.uniform(k1, (10,), jnp.float32, -bound1, bound1)
    b1 = jax.random.uniform(k2, (10,), jnp.float32, -bound1, bound1)
    w2 = jax.random.uniform(k3, (10,), jnp.float32, -bound2, bound2)
    b2 = jax.random.uniform(k4, (1,), jnp.float32, -bound2, bound2)
    return w1, b1, w2, b2


def _reference(x, w1, b1, w2, b2):
    # Same math as the PyTorch forward.
    return (jnp.tanh(x @ w1.reshape(1, 10) + b1.reshape(1, 10)) @ w2.reshape(10, 1)
            + b2.reshape(1, 1))


if __name__ == "__main__":
    key = jax.random.PRNGKey(0)
    kx, kp = jax.random.split(key)
    w1, b1, w2, b2 = init_params(kp)

    # 1) Small batch forced through the Pallas kernel (ragged-tail padding path).
    x_small = jax.random.normal(kx, (100, 1), jnp.float32)
    ref_small = _reference(x_small, w1, b1, w2, b2)
    out_small = jax.block_until_ready(
        nonlinear_regression_forward(x_small, w1, b1, w2, b2,
                                     small_batch_threshold=0))
    assert out_small.shape == (100, 1)
    assert jnp.allclose(out_small, ref_small, atol=1e-5, rtol=1e-5)

    # 2) Default dispatch: small batch takes the fused jnp fallback.
    out_fb = jax.block_until_ready(nonlinear_regression_forward(x_small, w1, b1, w2, b2))
    assert jnp.allclose(out_fb, ref_small, atol=1e-5, rtol=1e-5)

    # 3) Moderate batch through the multi-block Pallas path (grid >= 2 steps).
    x_big = jax.random.normal(kx, (20_000, 1), jnp.float32)
    ref_big = _reference(x_big, w1, b1, w2, b2)
    out_big = jax.block_until_ready(
        nonlinear_regression_forward(x_big, w1, b1, w2, b2,
                                     small_batch_threshold=0))
    assert out_big.shape == (20_000, 1)
    assert jnp.allclose(out_big, ref_big, atol=1e-5, rtol=1e-5)

    # 4) Optional bf16 tanh path (v6e/v7x compute-bound lever), f32 accumulate.
    out_bf16 = jax.block_until_ready(
        nonlinear_regression_forward(x_small, w1, b1, w2, b2,
                                     small_batch_threshold=0,
                                     compute_dtype=jnp.bfloat16))
    assert jnp.all(jnp.isfinite(out_bf16))
    assert jnp.max(jnp.abs(out_bf16 - ref_small)) < 0.1

    print("KERNEL_OK")
</pallas_src>

<mosaic_0001>
module attributes {stable_mosaic.version = 11 : i64} {
  func.func @_mlp_kernel(%arg0: i32, %arg1: memref<8x512xf32, #tpu.memory_space<vmem>>, %arg2: memref<10xf32, #tpu.memory_space<smem>>, %arg3: memref<10xf32, #tpu.memory_space<smem>>, %arg4: memref<10xf32, #tpu.memory_space<smem>>, %arg5: memref<1xf32, #tpu.memory_space<smem>>, %arg6: memref<8x512xf32, #tpu.memory_space<vmem>>) attributes {dimension_semantics = [#tpu.dimension_semantics<parallel>], iteration_bounds = array<i64: 1>, scalar_prefetch = 0 : i64, scratch_operands = 0 : i64, tpu.core_type = #tpu.core_type<tc>, window_params = [{transform_indices = @transform_0, window_bounds = array<i64: 8, 512>}, {transform_indices = @transform_1, window_bounds = array<i64: 10>}, {transform_indices = @transform_2, window_bounds = array<i64: 10>}, {transform_indices = @transform_3, window_bounds = array<i64: 10>}, {transform_indices = @transform_4, window_bounds = array<i64: 1>}, {transform_indices = @transform_5, window_bounds = array<i64: 8, 512>}]} {
    %c0 = arith.constant 0 : index
    %c0_0 = arith.constant 0 : index
    %0 = vector.load %arg1[%c0, %c0_0] : memref<8x512xf32, #tpu.memory_space<vmem>>, vector<8x512xf32>
    %c0_1 = arith.constant 0 : index
    %1 = memref.load %arg5[%c0_1] : memref<1xf32, #tpu.memory_space<smem>>
    %2 = vector.broadcast %1 : f32 to vector<8x512xf32>
    %cst = arith.constant 0.000000e+00 : f32
    %3 = vector.broadcast %cst : f32 to vector<8x512xf32>
    %c0_2 = arith.constant 0 : index
    %4 = memref.load %arg2[%c0_2] : memref<10xf32, #tpu.memory_space<smem>>
    %5 = vector.broadcast %4 : f32 to vector<8x512xf32>
    %6 = arith.mulf %5, %0 : vector<8x512xf32>
    %c0_3 = arith.constant 0 : index
    %7 = memref.load %arg3[%c0_3] : memref<10xf32, #tpu.memory_space<smem>>
    %8 = vector.broadcast %7 : f32 to vector<8x512xf32>
    %9 = arith.addf %6, %8 : vector<8x512xf32>
    %10 = math.tanh %9 : vector<8x512xf32>
    %c0_4 = arith.constant 0 : index
    %11 = memref.load %arg4[%c0_4] : memref<10xf32, #tpu.memory_space<smem>>
    %12 = vector.broadcast %11 : f32 to vector<8x512xf32>
    %13 = arith.mulf %12, %10 : vector<8x512xf32>
    %14 = arith.addf %2, %13 : vector<8x512xf32>
    %c1 = arith.constant 1 : index
    %15 = memref.load %arg2[%c1] : memref<10xf32, #tpu.memory_space<smem>>
    %16 = vector.broadcast %15 : f32 to vector<8x512xf32>
    %17 = arith.mulf %16, %0 : vector<8x512xf32>
    %c1_5 = arith.constant 1 : index
    %18 = memref.load %arg3[%c1_5] : memref<10xf32, #tpu.memory_space<smem>>
    %19 = vector.broadcast %18 : f32 to vector<8x512xf32>
    %20 = arith.addf %17, %19 : vector<8x512xf32>
    %21 = math.tanh %20 : vector<8x512xf32>
    %c1_6 = arith.constant 1 : index
    %22 = memref.load %arg4[%c1_6] : memref<10xf32, #tpu.memory_space<smem>>
    %23 = vector.broadcast %22 : f32 to vector<8x512xf32>
    %24 = arith.mulf %23, %21 : vector<8x512xf32>
    %25 = arith.addf %3, %24 : vector<8x512xf32>
    %c2 = arith.constant 2 : index
    %26 = memref.load %arg2[%c2] : memref<10xf32, #tpu.memory_space<smem>>
    %27 = vector.broadcast %26 : f32 to vector<8x512xf32>
    %28 = arith.mulf %27, %0 : vector<8x512xf32>
    %c2_7 = arith.constant 2 : index
    %29 = memref.load %arg3[%c2_7] : memref<10xf32, #tpu.memory_space<smem>>
    %30 = vector.broadcast %29 : f32 to vector<8x512xf32>
    %31 = arith.addf %28, %30 : vector<8x512xf32>
    %32 = math.tanh %31 : vector<8x512xf32>
    %c2_8 = arith.constant 2 : index
    %33 = memref.load %arg4[%c2_8] : memref<10xf32, #tpu.memory_space<smem>>
    %34 = vector.broadcast %33 : f32 to vector<8x512xf32>
    %35 = arith.mulf %34, %32 : vector<8x512xf32>
    %36 = arith.addf %14, %35 : vector<8x512xf32>
    %c3 = arith.constant 3 : index
    %37 = memref.load %arg2[%c3] : memref<10xf32, #tpu.memory_space<smem>>
    %38 = vector.broadcast %37 : f32 to vector<8x512xf32>
    %39 = arith.mulf %38, %0 : vector<8x512xf32>
    %c3_9 = arith.constant 3 : index
    %40 = memref.load %arg3[%c3_9] : memref<10xf32, #tpu.memory_space<smem>>
    %41 = vector.broadcast %40 : f32 to vector<8x512xf32>
    %42 = arith.addf %39, %41 : vector<8x512xf32>
    %43 = math.tanh %42 : vector<8x512xf32>
    %c3_10 = arith.constant 3 : index
    %44 = memref.load %arg4[%c3_10] : memref<10xf32, #tpu.memory_space<smem>>
    %45 = vector.broadcast %44 : f32 to vector<8x512xf32>
    %46 = arith.mulf %45, %43 : vector<8x512xf32>
    %47 = arith.addf %25, %46 : vector<8x512xf32>
    %c4 = arith.constant 4 : index
    %48 = memref.load %arg2[%c4] : memref<10xf32, #tpu.memory_space<smem>>
    %49 = vector.broadcast %48 : f32 to vector<8x512xf32>
    %50 = arith.mulf %49, %0 : vector<8x512xf32>
    %c4_11 = arith.constant 4 : index
    %51 = memref.load %arg3[%c4_11] : memref<10xf32, #tpu.memory_space<smem>>
    %52 = vector.broadcast %51 : f32 to vector<8x512xf32>
    %53 = arith.addf %50, %52 : vector<8x512xf32>
    %54 = math.tanh %53 : vector<8x512xf32>
    %c4_12 = arith.constant 4 : index
    %55 = memref.load %arg4[%c4_12] : memref<10xf32, #tpu.memory_space<smem>>
    %56 = vector.broadcast %55 : f32 to vector<8x512xf32>
    %57 = arith.mulf %56, %54 : vector<8x512xf32>
    %58 = arith.addf %36, %57 : vector<8x512xf32>
    %c5 = arith.constant 5 : index
    %59 = memref.load %arg2[%c5] : memref<10xf32, #tpu.memory_space<smem>>
    %60 = vector.broadcast %59 : f32 to vector<8x512xf32>
    %61 = arith.mulf %60, %0 : vector<8x512xf32>
    %c5_13 = arith.constant 5 : index
    %62 = memref.load %arg3[%c5_13] : memref<10xf32, #tpu.memory_space<smem>>
    %63 = vector.broadcast %62 : f32 to vector<8x512xf32>
    %64 = arith.addf %61, %63 : vector<8x512xf32>
    %65 = math.tanh %64 : vector<8x512xf32>
    %c5_14 = arith.constant 5 : index
    %66 = memref.load %arg4[%c5_14] : memref<10xf32, #tpu.memory_space<smem>>
    %67 = vector.broadcast %66 : f32 to vector<8x512xf32>
    %68 = arith.mulf %67, %65 : vector<8x512xf32>
    %69 = arith.addf %47, %68 : vector<8x512xf32>
    %c6 = arith.constant 6 : index
    %70 = memref.load %arg2[%c6] : memref<10xf32, #tpu.memory_space<smem>>
    %71 = vector.broadcast %70 : f32 to vector<8x512xf32>
    %72 = arith.mulf %71, %0 : vector<8x512xf32>
    %c6_15 = arith.constant 6 : index
    %73 = memref.load %arg3[%c6_15] : memref<10xf32, #tpu.memory_space<smem>>
    %74 = vector.broadcast %73 : f32 to vector<8x512xf32>
    %75 = arith.addf %72, %74 : vector<8x512xf32>
    %76 = math.tanh %75 : vector<8x512xf32>
    %c6_16 = arith.constant 6 : index
    %77 = memref.load %arg4[%c6_16] : memref<10xf32, #tpu.memory_space<smem>>
    %78 = vector.broadcast %77 : f32 to vector<8x512xf32>
    %79 = arith.mulf %78, %76 : vector<8x512xf32>
    %80 = arith.addf %58, %79 : vector<8x512xf32>
    %c7 = arith.constant 7 : index
    %81 = memref.load %arg2[%c7] : memref<10xf32, #tpu.memory_space<smem>>
    %82 = vector.broadcast %81 : f32 to vector<8x512xf32>
    %83 = arith.mulf %82, %0 : vector<8x512xf32>
    %c7_17 = arith.constant 7 : index
    %84 = memref.load %arg3[%c7_17] : memref<10xf32, #tpu.memory_space<smem>>
    %85 = vector.broadcast %84 : f32 to vector<8x512xf32>
    %86 = arith.addf %83, %85 : vector<8x512xf32>
    %87 = math.tanh %86 : vector<8x512xf32>
    %c7_18 = arith.constant 7 : index
    %88 = memref.load %arg4[%c7_18] : memref<10xf32, #tpu.memory_space<smem>>
    %89 = vector.broadcast %88 : f32 to vector<8x512xf32>
    %90 = arith.mulf %89, %87 : vector<8x512xf32>
    %91 = arith.addf %69, %90 : vector<8x512xf32>
    %c8 = arith.constant 8 : index
    %92 = memref.load %arg2[%c8] : memref<10xf32, #tpu.memory_space<smem>>
    %93 = vector.broadcast %92 : f32 to vector<8x512xf32>
    %94 = arith.mulf %93, %0 : vector<8x512xf32>
    %c8_19 = arith.constant 8 : index
    %95 = memref.load %arg3[%c8_19] : memref<10xf32, #tpu.memory_space<smem>>
    %96 = vector.broadcast %95 : f32 to vector<8x512xf32>
    %97 = arith.addf %94, %96 : vector<8x512xf32>
    %98 = math.tanh %97 : vector<8x512xf32>
    %c8_20 = arith.constant 8 : index
    %99 = memref.load %arg4[%c8_20] : memref<10xf32, #tpu.memory_space<smem>>
    %100 = vector.broadcast %99 : f32 to vector<8x512xf32>
    %101 = arith.mulf %100, %98 : vector<8x512xf32>
    %102 = arith.addf %80, %101 : vector<8x512xf32>
    %c9 = arith.constant 9 : index
    %103 = memref.load %arg2[%c9] : memref<10xf32, #tpu.memory_space<smem>>
    %104 = vector.broadcast %103 : f32 to vector<8x512xf32>
    %105 = arith.mulf %104, %0 : vector<8x512xf32>
    %c9_21 = arith.constant 9 : index
    %106 = memref.load %arg3[%c9_21] : memref<10xf32, #tpu.memory_space<smem>>
    %107 = vector.broadcast %106 : f32 to vector<8x512xf32>
    %108 = arith.addf %105, %107 : vector<8x512xf32>
    %109 = math.tanh %108 : vector<8x512xf32>
    %c9_22 = arith.constant 9 : index
    %110 = memref.load %arg4[%c9_22] : memref<10xf32, #tpu.memory_space<smem>>
    %111 = vector.broadcast %110 : f32 to vector<8x512xf32>
    %112 = arith.mulf %111, %109 : vector<8x512xf32>
    %113 = arith.addf %91, %112 : vector<8x512xf32>
    %114 = arith.addf %102, %113 : vector<8x512xf32>
    %c0_23 = arith.constant 0 : index
    %c0_24 = arith.constant 0 : index
    %115 = vector.load %arg6[%c0_23, %c0_24] : memref<8x512xf32, #tpu.memory_space<vmem>>, vector<8x512xf32>
    tpu.vector_store %arg6[%c0_23, %c0_24], %114 {strides = array<i32>} : memref<8x512xf32, #tpu.memory_space<vmem>>, vector<8x512xf32>,
    return
  }
  func.func @transform_0(%arg0: i32) -> (i32, i32) {
    %c0_i32 = arith.constant 0 : i32
    %c0_i32_0 = arith.constant 0 : i32
    return %arg0, %c0_i32 : i32, i32
  }
  func.func @transform_1(%arg0: i32) -> i32 {
    %c0_i32 = arith.constant 0 : i32
    %c0_i32_0 = arith.constant 0 : i32
    return %c0_i32 : i32
  }
  func.func @transform_2(%arg0: i32) -> i32 {
    %c0_i32 = arith.constant 0 : i32
    %c0_i32_0 = arith.constant 0 : i32
    return %c0_i32 : i32
  }
  func.func @transform_3(%arg0: i32) -> i32 {
    %c0_i32 = arith.constant 0 : i32
    %c0_i32_0 = arith.constant 0 : i32
    return %c0_i32 : i32
  }
  func.func @transform_4(%arg0: i32) -> i32 {
    %c0_i32 = arith.constant 0 : i32
    %c0_i32_0 = arith.constant 0 : i32
    return %c0_i32 : i32
  }
  func.func @transform_5(%arg0: i32) -> (i32, i32) {
    %c0_i32 = arith.constant 0 : i32
    %c0_i32_0 = arith.constant 0 : i32
    return %arg0, %c0_i32 : i32, i32
  }
}

</mosaic_0001>

<llo_original>
// kernel: tpu_custom_call.1
$region0: #{tpu_custom_call.1}
  #allocation0 [shape = 'u32[]', space=smem, size = 0x4, offset = 0x4, fixed_abs, tag = 'smem constant byte address 0x4 - core index']
  #allocation1 [shape = 'u32[144,128]{1,0:T(1,128)}', space=vmem, size = 0x12000, scoped, tag = 'internal scratch']
  #allocation2 [shape = 'f32[1]{0:T(128)S(6)}', space=smem, size = 0x200, scoped, tag = 'scoped memory for tpu_custom_call.1']
  %s0 = inlined_call_operand.hbm [shape: f32[8,512], index: 0, kind: input, shape index: {}]
  %s1 = inlined_call_operand.vmem [shape: f32[10], index: 1, kind: input, shape index: {}]
  %s2 = inlined_call_operand.vmem [shape: f32[10], index: 2, kind: input, shape index: {}]
  %s3 = inlined_call_operand.vmem [shape: f32[10], index: 3, kind: input, shape index: {}]
  %s4 = inlined_call_operand.<no memory space> [shape: f32[1], index: 4, kind: input, shape index: {}]
  %s5 = inlined_call_operand.hbm [shape: f32[8,512], index: 5, kind: output, shape index: {}]
  %s6 = sld [smem:[#allocation0]]
  $region46: #{tpu_custom_call.1} parent=0
    _
  %s8 = ssub.s32 1, %s6
  %s9 = scalar_select 0, %s8, %s6
  %10 = sst [smem:[#allocation2]] %s4
  $region1: #{tpu_custom_call.1} parent=0
    #allocation3 [shape = 'u8[16384]{0}', space=vmem, size = 0x4000, scoped, tag = 'input window, operand 0, single buffered']
    #allocation4 [shape = 's32[1]{0}', space=sflag, size = 0x4, scoped, tag = 'scoped memory for tpu_custom_call.1']
    #allocation5 [shape = 's32[1]{0}', space=sflag, size = 0x4, scoped, tag = 'scoped memory for tpu_custom_call.1']
    #allocation6 [shape = 's32[1]{0}', space=sflag, size = 0x4, scoped, tag = 'scoped memory for tpu_custom_call.1']
    #allocation7 [shape = 'u8[512]{0}', space=smem, size = 0x200, scoped, tag = 'input window, operand 1, single buffered']
    #allocation8 [shape = 'u8[512]{0}', space=smem, size = 0x200, scoped, tag = 'input window, operand 2, single buffered']
    #allocation9 [shape = 's32[1]{0}', space=sflag, size = 0x4, scoped, tag = 'scoped memory for tpu_custom_call.1']
    #allocation10 [shape = 'u8[512]{0}', space=smem, size = 0x200, scoped, tag = 'input window, operand 3, single buffered']
    #allocation11 [shape = 'u8[16384]{0}', space=vmem, size = 0x4000, scoped, tag = 'output window, operand 0, single buffered']
    %11 = vsyncpa [#allocation4], 0
    %12 = vsyncpa [#allocation6], 0
    %13 = vsyncpa [#allocation9], 0
    %14 = vsyncpa [#allocation5], 0
    // Predicated region
    $region2: #{tpu_custom_call.1} parent=1 // pred_check
      _
    $region3: #{tpu_custom_call.1} parent=1 // pred_check_branch
      %16 = sbr.rel (0) target = $region5
    $region4: #{tpu_custom_call.1} parent=1 // pred_region
      %s18 = ssub.s32 512, 512
      %19 = vsyncadd [#allocation4], %s18
      %s21 = sshll.u32 [#allocation3], 4
      %s22 = int_to_ptr.vmem [resolvable:$true] %s21
      %24 = dma.hbm_to_vmem [thread:$0]  %s0, 512, %s22, [#allocation4]
    $region5: #{tpu_custom_call.1} parent=1 // pred_fallthru
      _
    // Predicated region
    $region6: #{tpu_custom_call.1} parent=1 // pred_check
      _
    $region7: #{tpu_custom_call.1} parent=1 // pred_check_branch
      %26 = sbr.rel (0) target = $region9
    $region8: #{tpu_custom_call.1} parent=1 // pred_region
      %s28 = ssub.s32 16, 16
      %29 = vsyncadd [#allocation6], %s28
      %s31 = sshll.u32 %s1, 4
      %s32 = int_to_ptr.vmem [resolvable:$true] %s31
      %34 = dma.vmem_to_smem %s32, 16, [#allocation7], [#allocation6]
    $region9: #{tpu_custom_call.1} parent=1 // pred_fallthru
      _
    // Predicated region
    $region10: #{tpu_custom_call.1} parent=1 // pred_check
      _
    $region11: #{tpu_custom_call.1} parent=1 // pred_check_branch
      %36 = sbr.rel (0) target = $region13
    $region12: #{tpu_custom_call.1} parent=1 // pred_region
      %s38 = ssub.s32 16, 16
      %39 = vsyncadd [#allocation9], %s38
      %s41 = sshll.u32 %s2, 4
      %s42 = int_to_ptr.vmem [resolvable:$true] %s41
      %44 = dma.vmem_to_smem %s42, 16, [#allocation8], [#allocation9]
    $region13: #{tpu_custom_call.1} parent=1 // pred_fallthru
      _
    // Predicated region
    $region14: #{tpu_custom_call.1} parent=1 // pred_check
      _
    $region15: #{tpu_custom_call.1} parent=1 // pred_check_branch
      %46 = sbr.rel (0) target = $region17
    $region16: #{tpu_custom_call.1} parent=1 // pred_region
      %s48 = ssub.s32 16, 16
      %49 = vsyncadd [#allocation9], %s48
      %s51 = sshll.u32 %s3, 4
      %s52 = int_to_ptr.vmem [resolvable:$true] %s51
      %54 = dma.vmem_to_smem %s52, 16, [#allocation10], [#allocation9]
    $region17: #{tpu_custom_call.1} parent=1 // pred_fallthru
      _
    // Predicated region
    $region18: #{tpu_custom_call.1} parent=1 // pred_check
      _
    $region19: #{tpu_custom_call.1} parent=1 // pred_check_branch
      %56 = sbr.rel (0) target = $region21
    $region20: #{tpu_custom_call.1} parent=1 // pred_region
      _
    $region21: #{tpu_custom_call.1} parent=1 // pred_fallthru
      _
    // Predicated region
    $region22: #{tpu_custom_call.1} parent=1 // pred_check
      _
    $region23: #{tpu_custom_call.1} parent=1 // pred_check_branch
      %58 = sbr.rel (0) target = $region25
    $region24: #{tpu_custom_call.1} parent=1 // pred_region
      %59 = dma.done [#allocation4], 512
    $region25: #{tpu_custom_call.1} parent=1 // pred_fallthru
      _
    // Predicated region
    $region26: #{tpu_custom_call.1} parent=1 // pred_check
      _
    $region27: #{tpu_custom_call.1} parent=1 // pred_check_branch
      %61 = sbr.rel (0) target = $region29
    $region28: #{tpu_custom_call.1} parent=1 // pred_region
      %62 = dma.done [#allocation6], 16
    $region29: #{tpu_custom_call.1} parent=1 // pred_fallthru
      _
    // Predicated region
    $region30: #{tpu_custom_call.1} parent=1 // pred_check
      _
    $region31: #{tpu_custom_call.1} parent=1 // pred_check_branch
      %64 = sbr.rel (0) target = $region33
    $region32: #{tpu_custom_call.1} parent=1 // pred_region
      %65 = dma.done [#allocation9], 16
    $region33: #{tpu_custom_call.1} parent=1 // pred_fallthru
      _
    // Predicated region
    $region34: #{tpu_custom_call.1} parent=1 // pred_check
      _
    $region35: #{tpu_custom_call.1} parent=1 // pred_check_branch
      %67 = sbr.rel (0) target = $region37
    $region36: #{tpu_custom_call.1} parent=1 // pred_region
      %68 = dma.done [#allocation9], 16
    $region37: #{tpu_custom_call.1} parent=1 // pred_fallthru
      _
    %69 = sfence
    %v70 = vld [vmem:[#allocation3] sm:$0xff]
    %v71 = vld [vmem:[#allocation3 + $0x8] sm:$0xff]
    %v72 = vld [vmem:[#allocation3 + $0x10] sm:$0xff]
    %v73 = vld [vmem:[#allocation3 + $0x18] sm:$0xff]
    %s74 = sld [smem:[#allocation2]]
    %v75 = vstv %s74
    %s76 = sld [smem:[#allocation7]]
    %v77 = vstv %s76
    %v78 = vmul.f32 %v77, %v70
    %v79 = vmul.f32 %v77, %v71
    %v80 = vmul.f32 %v77, %v72
    %v81 = vmul.f32 %v77, %v73
    %s82 = sld [smem:[#allocation8]]
    %v83 = vstv %s82
    %v84 = vadd.f32 %v78, %v83
    %v85 = vadd.f32 %v79, %v83
    %v86 = vadd.f32 %v80, %v83
    %v87 = vadd.f32 %v81, %v83
    %v88 = vtanh.pop %v84
    %v89 = vtanh.pop %v85
    %v90 = vtanh.pop %v86
    %v91 = vtanh.pop %v87
    %s92 = sld [smem:[#allocation10]]
    %v93 = vstv %s92
    %v94 = vmul.f32 %v93, %v88
    %v95 = vmul.f32 %v93, %v89
    %v96 = vmul.f32 %v93, %v90
    %v97 = vmul.f32 %v93, %v91
    %v98 = vadd.f32 %v75, %v94
    %v99 = vadd.f32 %v75, %v95
    %v100 = vadd.f32 %v75, %v96
    %v101 = vadd.f32 %v75, %v97
    %s102 = sld [smem:[#allocation7 + $0x1]]
    %v103 = vstv %s102
    %v104 = vmul.f32 %v103, %v70
    %v105 = vmul.f32 %v103, %v71
    %v106 = vmul.f32 %v103, %v72
    %v107 = vmul.f32 %v103, %v73
    %s108 = sld [smem:[#allocation8 + $0x1]]
    %v109 = vstv %s108
    %v110 = vadd.f32 %v104, %v109
    %v111 = vadd.f32 %v105, %v109
    %v112 = vadd.f32 %v106, %v109
    %v113 = vadd.f32 %v107, %v109
    %v114 = vtanh.pop %v110
    %v115 = vtanh.pop %v111
    %v116 = vtanh.pop %v112
    %v117 = vtanh.pop %v113
    %s118 = sld [smem:[#allocation10 + $0x1]]
    %v119 = vstv %s118
    %v120 = vmul.f32 %v119, %v114
    %v121 = vmul.f32 %v119, %v115
    %v122 = vmul.f32 %v119, %v116
    %v123 = vmul.f32 %v119, %v117
    %v124 = vadd.f32 %v120, 0.0
    %v125 = vadd.f32 %v121, 0.0
    %v126 = vadd.f32 %v122, 0.0
    %v127 = vadd.f32 %v123, 0.0
    %s128 = sld [smem:[#allocation7 + $0x2]]
    %v129 = vstv %s128
    %v130 = vmul.f32 %v129, %v70
    %v131 = vmul.f32 %v129, %v71
    %v132 = vmul.f32 %v129, %v72
    %v133 = vmul.f32 %v129, %v73
    %s134 = sld [smem:[#allocation8 + $0x2]]
    %v135 = vstv %s134
    %v136 = vadd.f32 %v130, %v135
    %v137 = vadd.f32 %v131, %v135
    %v138 = vadd.f32 %v132, %v135
    %v139 = vadd.f32 %v133, %v135
    %v140 = vtanh.pop %v136
    %v141 = vtanh.pop %v137
    %v142 = vtanh.pop %v138
    %v143 = vtanh.pop %v139
    %s144 = sld [smem:[#allocation10 + $0x2]]
    %v145 = vstv %s144
    %v146 = vmul.f32 %v145, %v140
    %v147 = vmul.f32 %v145, %v141
    %v148 = vmul.f32 %v145, %v142
    %v149 = vmul.f32 %v145, %v143
    %v150 = vadd.f32 %v98, %v146
    %v151 = vadd.f32 %v99, %v147
    %v152 = vadd.f32 %v100, %v148
    %v153 = vadd.f32 %v101, %v149
    %s154 = sld [smem:[#allocation7 + $0x3]]
    %v155 = vstv %s154
    %v156 = vmul.f32 %v155, %v70
    %v157 = vmul.f32 %v155, %v71
    %v158 = vmul.f32 %v155, %v72
    %v159 = vmul.f32 %v155, %v73
    %s160 = sld [smem:[#allocation8 + $0x3]]
    %v161 = vstv %s160
    %v162 = vadd.f32 %v156, %v161
    %v163 = vadd.f32 %v157, %v161
    %v164 = vadd.f32 %v158, %v161
    %v165 = vadd.f32 %v159, %v161
    %v166 = vtanh.pop %v162
    %v167 = vtanh.pop %v163
    %v168 = vtanh.pop %v164
    %v169 = vtanh.pop %v165
    %s170 = sld [smem:[#allocation10 + $0x3]]
    %v171 = vstv %s170
    %v172 = vmul.f32 %v171, %v166
    %v173 = vmul.f32 %v171, %v167
    %v174 = vmul.f32 %v171, %v168
    %v175 = vmul.f32 %v171, %v169
    %v176 = vadd.f32 %v124, %v172
    %v177 = vadd.f32 %v125, %v173
    %v178 = vadd.f32 %v126, %v174
    %v179 = vadd.f32 %v127, %v175
    %s180 = sld [smem:[#allocation7 + $0x4]]
    %v181 = vstv %s180
    %v182 = vmul.f32 %v181, %v70
    %v183 = vmul.f32 %v181, %v71
    %v184 = vmul.f32 %v181, %v72
    %v185 = vmul.f32 %v181, %v73
    %s186 = sld [smem:[#allocation8 + $0x4]]
    %v187 = vstv %s186
    %v188 = vadd.f32 %v182, %v187
    %v189 = vadd.f32 %v183, %v187
    %v190 = vadd.f32 %v184, %v187
    %v191 = vadd.f32 %v185, %v187
    %v192 = vtanh.pop %v188
    %v193 = vtanh.pop %v189
    %v194 = vtanh.pop %v190
    %v195 = vtanh.pop %v191
    %s196 = sld [smem:[#allocation10 + $0x4]]
    %v197 = vstv %s196
    %v198 = vmul.f32 %v197, %v192
    %v199 = vmul.f32 %v197, %v193
    %v200 = vmul.f32 %v197, %v194
    %v201 = vmul.f32 %v197, %v195
    %v202 = vadd.f32 %v150, %v198
    %v203 = vadd.f32 %v151, %v199
    %v204 = vadd.f32 %v152, %v200
    %v205 = vadd.f32 %v153, %v201
    %s206 = sld [smem:[#allocation7 + $0x5]]
    %v207 = vstv %s206
    %v208 = vmul.f32 %v207, %v70
    %v209 = vmul.f32 %v207, %v71
    %v210 = vmul.f32 %v207, %v72
    %v211 = vmul.f32 %v207, %v73
    %s212 = sld [smem:[#allocation8 + $0x5]]
    %v213 = vstv %s212
    %v214 = vadd.f32 %v208, %v213
    %v215 = vadd.f32 %v209, %v213
    %v216 = vadd.f32 %v210, %v213
    %v217 = vadd.f32 %v211, %v213
    %v218 = vtanh.pop %v214
    %v219 = vtanh.pop %v215
    %v220 = vtanh.pop %v216
    %v221 = vtanh.pop %v217
    %s222 = sld [smem:[#allocation10 + $0x5]]
    %v223 = vstv %s222
    %v224 = vmul.f32 %v223, %v218
    %v225 = vmul.f32 %v223, %v219
    %v226 = vmul.f32 %v223, %v220
    %v227 = vmul.f32 %v223, %v221
    %v228 = vadd.f32 %v176, %v224
    %v229 = vadd.f32 %v177, %v225
    %v230 = vadd.f32 %v178, %v226
    %v231 = vadd.f32 %v179, %v227
    %s232 = sld [smem:[#allocation7 + $0x6]]
    %v233 = vstv %s232
    %v234 = vmul.f32 %v233, %v70
    %v235 = vmul.f32 %v233, %v71
    %v236 = vmul.f32 %v233, %v72
    %v237 = vmul.f32 %v233, %v73
    %s238 = sld [smem:[#allocation8 + $0x6]]
    %v239 = vstv %s238
    %v240 = vadd.f32 %v234, %v239
    %v241 = vadd.f32 %v235, %v239
    %v242 = vadd.f32 %v236, %v239
    %v243 = vadd.f32 %v237, %v239
    %v244 = vtanh.pop %v240
    %v245 = vtanh.pop %v241
    %v246 = vtanh.pop %v242
    %v247 = vtanh.pop %v243
    %s248 = sld [smem:[#allocation10 + $0x6]]
    %v249 = vstv %s248
    %v250 = vmul.f32 %v249, %v244
    %v251 = vmul.f32 %v249, %v245
    %v252 = vmul.f32 %v249, %v246
    %v253 = vmul.f32 %v249, %v247
    %v254 = vadd.f32 %v202, %v250
    %v255 = vadd.f32 %v203, %v251
    %v256 = vadd.f32 %v204, %v252
    %v257 = vadd.f32 %v205, %v253
    %s258 = sld [smem:[#allocation7 + $0x7]]
    %v259 = vstv %s258
    %v260 = vmul.f32 %v259, %v70
    %v261 = vmul.f32 %v259, %v71
    %v262 = vmul.f32 %v259, %v72
    %v263 = vmul.f32 %v259, %v73
    %s264 = sld [smem:[#allocation8 + $0x7]]
    %v265 = vstv %s264
    %v266 = vadd.f32 %v260, %v265
    %v267 = vadd.f32 %v261, %v265
    %v268 = vadd.f32 %v262, %v265
    %v269 = vadd.f32 %v263, %v265
    %v270 = vtanh.pop %v266
    %v271 = vtanh.pop %v267
    %v272 = vtanh.pop %v268
    %v273 = vtanh.pop %v269
    %s274 = sld [smem:[#allocation10 + $0x7]]
    %v275 = vstv %s274
    %v276 = vmul.f32 %v275, %v270
    %v277 = vmul.f32 %v275, %v271
    %v278 = vmul.f32 %v275, %v272
    %v279 = vmul.f32 %v275, %v273
    %v280 = vadd.f32 %v228, %v276
    %v281 = vadd.f32 %v229, %v277
    %v282 = vadd.f32 %v230, %v278
    %v283 = vadd.f32 %v231, %v279
    %s284 = sld [smem:[#allocation7 + $0x8]]
    %v285 = vstv %s284
    %v286 = vmul.f32 %v285, %v70
    %v287 = vmul.f32 %v285, %v71
    %v288 = vmul.f32 %v285, %v72
    %v289 = vmul.f32 %v285, %v73
    %s290 = sld [smem:[#allocation8 + $0x8]]
    %v291 = vstv %s290
    %v292 = vadd.f32 %v286, %v291
    %v293 = vadd.f32 %v287, %v291
    %v294 = vadd.f32 %v288, %v291
    %v295 = vadd.f32 %v289, %v291
    %v296 = vtanh.pop %v292
    %v297 = vtanh.pop %v293
    %v298 = vtanh.pop %v294
    %v299 = vtanh.pop %v295
    %s300 = sld [smem:[#allocation10 + $0x8]]
    %v301 = vstv %s300
    %v302 = vmul.f32 %v301, %v296
    %v303 = vmul.f32 %v301, %v297
    %v304 = vmul.f32 %v301, %v298
    %v305 = vmul.f32 %v301, %v299
    %v306 = vadd.f32 %v254, %v302
    %v307 = vadd.f32 %v255, %v303
    %v308 = vadd.f32 %v256, %v304
    %v309 = vadd.f32 %v257, %v305
    %s310 = sld [smem:[#allocation7 + $0x9]]
    %v311 = vstv %s310
    %v312 = vmul.f32 %v311, %v70
    %v313 = vmul.f32 %v311, %v71
    %v314 = vmul.f32 %v311, %v72
    %v315 = vmul.f32 %v311, %v73
    %s316 = sld [smem:[#allocation8 + $0x9]]
    %v317 = vstv %s316
    %v318 = vadd.f32 %v312, %v317
    %v319 = vadd.f32 %v313, %v317
    %v320 = vadd.f32 %v314, %v317
    %v321 = vadd.f32 %v315, %v317
    %v322 = vtanh.pop %v318
    %v323 = vtanh.pop %v319
    %v324 = vtanh.pop %v320
    %v325 = vtanh.pop %v321
    %s326 = sld [smem:[#allocation10 + $0x9]]
    %v327 = vstv %s326
    %v328 = vmul.f32 %v327, %v322
    %v329 = vmul.f32 %v327, %v323
    %v330 = vmul.f32 %v327, %v324
    %v331 = vmul.f32 %v327, %v325
    %v332 = vadd.f32 %v280, %v328
    %v333 = vadd.f32 %v281, %v329
    %v334 = vadd.f32 %v282, %v330
    %v335 = vadd.f32 %v283, %v331
    %v336 = vadd.f32 %v306, %v332
    %v337 = vadd.f32 %v307, %v333
    %v338 = vadd.f32 %v308, %v334
    %v339 = vadd.f32 %v309, %v335
    %340 = vst [vmem:[#allocation11] sm:$0xff] %v336
    %341 = vst [vmem:[#allocation11 + $0x8] sm:$0xff] %v337
    %342 = vst [vmem:[#allocation11 + $0x10] sm:$0xff] %v338
    %343 = vst [vmem:[#allocation11 + $0x18] sm:$0xff] %v339
    // Predicated region
    $region38: #{tpu_custom_call.1} parent=1 // pred_check
      _
    $region39: #{tpu_custom_call.1} parent=1 // pred_check_branch
      %345 = sbr.rel (0) target = $region41
    $region40: #{tpu_custom_call.1} parent=1 // pred_region
      %s347 = ssub.s32 512, 512
      %348 = vsyncadd [#allocation5], %s347
      %s350 = sshll.u32 [#allocation11], 4
      %s351 = int_to_ptr.vmem [resolvable:$true] %s350
      %353 = dma.vmem_to_hbm [thread:$0]  %s351, 512, %s5, [#allocation5]
    $region41: #{tpu_custom_call.1} parent=1 // pred_fallthru
      _
    // Predicated region
    $region42: #{tpu_custom_call.1} parent=1 // pred_check
      _
    $region43: #{tpu_custom_call.1} parent=1 // pred_check_branch
      %355 = sbr.rel (0) target = $region45
    $region44: #{tpu_custom_call.1} parent=1 // pred_region
      %356 = dma.done [#allocation5], 512
    $region45: #{tpu_custom_call.1} parent=1 // pred_fallthru
      _
    %357 = vsyncpa [#allocation4], 1
    %358 = vsyncpa [#allocation5], 1
    %359 = vsyncpa [#allocation6], 1
    %360 = vsyncpa [#allocation9], 1

</llo_original>
